<compile_context>
chip_gen: v6e
topology: v6e:2x2x1
jax: 0.10.0
libtpu: 0.0.40
codegen_flags: <defaults>
</compile_context>

<pallas_src>
import functools

import jax
import jax.numpy as jnp
from jax.experimental import pallas as pl
from jax.experimental.pallas import tpu as pltpu  # noqa: F401  (TPU backend)

BN_EPS = 1e-5


# --------------------------------------------------------------------------
# Fused Pallas kernel: single MXU matmul + BN(batch stats) + ReLU
# --------------------------------------------------------------------------
def basic_conv_kernel(p_ref, w_ref, gb_ref, o_ref, *, N, P):
    """p_ref : (K*K*Cin, N*Ho*Wo)  bf16 im2col patch slab (positions on lanes)
       w_ref : (Cout,   K*K*Cin)   bf16 repacked conv weights
       gb_ref: (Cout, 2)           f32  packed [gamma | beta]
       o_ref : (N, Cout, Ho*Wo)    f32  NCHW-flat output (lane-dense)."""
    # --- convolution: one (Cout, KKC) x (KKC, NP) matmul, f32 accumulation --
    acc = jnp.dot(w_ref[...], p_ref[...],
                  preferred_element_type=jnp.float32)          # (Cout, NP)

    # --- BatchNorm2d, training-mode batch statistics (biased variance) ------
    mu = jnp.mean(acc, axis=1, keepdims=True)                  # (Cout, 1)
    d = acc - mu
    var = jnp.mean(d * d, axis=1, keepdims=True)               # centered: stable
    scale = gb_ref[:, 0:1] * jax.lax.rsqrt(jnp.maximum(var, 0.0) + BN_EPS)
    y = jnp.maximum(d * scale + gb_ref[:, 1:2], 0.0)           # affine + ReLU

    # --- lane-aligned per-sample stores (P = Ho*Wo is a multiple of 128) ----
    for n in range(N):
        o_ref[n] = y[:, n * P:(n + 1) * P]


# --------------------------------------------------------------------------
# Wrapper: PyTorch-style NCHW in, NCHW out
# --------------------------------------------------------------------------
def basic_conv_forward(params, x_nchw, *, kernel_size=3, padding=1):
    N, Cin, H, W = x_nchw.shape
    K = kernel_size
    Ho = H + 2 * padding - K + 1          # stride = 1, dilation = 1
    Wo = W + 2 * padding - K + 1
    P = Ho * Wo
    Cout = params["w"].shape[0]

    # one-time boundary prep (~72 KB total): zero-pad + im2col patch slab
    xp = jnp.pad(x_nchw.astype(jnp.float32),
                 ((0, 0), (0, 0), (padding, padding), (padding, padding)))
    taps = [xp[:, :, dy:dy + Ho, dx:dx + Wo]          # (N, Cin, Ho, Wo) per tap
            for dy in range(K) for dx in range(K)]
    # (K*K, N, Cin, Ho, Wo) -> (K*K, Cin, N, Ho, Wo) -> (K*K*Cin, N*Ho*Wo):
    # contraction index (tap*Cin + ci) on sublanes, positions lane-dense.
    patches = jnp.transpose(jnp.stack(taps, axis=0), (0, 2, 1, 3, 4))
    patches = patches.reshape(K * K * Cin, N * P).astype(jnp.bfloat16)

    # OIHW -> (Cout, K*K*Cin), matching the (ky*K + kx)*Cin + ci patch index
    wt = jnp.transpose(params["w"].astype(jnp.float32),
                       (0, 2, 3, 1)).reshape(Cout, K * K * Cin).astype(jnp.bfloat16)

    # conv bias intentionally dropped: cancels exactly in training-mode BN.
    gb = jnp.stack([params["gamma"].astype(jnp.float32),
                    params["beta"].astype(jnp.float32)], axis=1)   # (Cout, 2)

    y = pl.pallas_call(
        functools.partial(basic_conv_kernel, N=N, P=P),
        out_shape=jax.ShapeDtypeStruct((N, Cout, P), jnp.float32),
    )(patches, wt, gb)

    return y.reshape(N, Cout, Ho, Wo)     # free contiguous view -> NCHW


# --------------------------------------------------------------------------
# Demo + self-check
# --------------------------------------------------------------------------
if __name__ == "__main__":
    N, Cin, H, W = 2, 4, 16, 16
    Cout, K, pad = 32, 3, 1

    key = jax.random.PRNGKey(0)
    kx, kw, kb, kg, kbe = jax.random.split(key, 5)
    x = jax.random.normal(kx, (N, Cin, H, W), dtype=jnp.float32)
    params = dict(
        w=0.05 * jax.random.normal(kw, (Cout, Cin, K, K), dtype=jnp.float32),
        b=0.05 * jax.random.normal(kb, (Cout,), dtype=jnp.float32),  # no-op pre-BN
        gamma=1.0 + 0.1 * jax.random.normal(kg, (Cout,), dtype=jnp.float32),
        beta=0.1 * jax.random.normal(kbe, (Cout,), dtype=jnp.float32),
    )

    fwd = jax.jit(functools.partial(basic_conv_forward, kernel_size=K, padding=pad))
    y = fwd(params, x)
    jax.block_until_ready(y)

    # pure-JAX reference: Conv2d(+bias) -> BatchNorm2d(batch stats) -> ReLU
    ref = jax.lax.conv_general_dilated(
        x, params["w"], window_strides=(1, 1),
        padding=[(pad, pad), (pad, pad)],
        dimension_numbers=("NCHW", "OIHW", "NCHW"))
    ref = ref + params["b"].reshape(1, Cout, 1, 1)   # cancels in BN below
    mu = jnp.mean(ref, axis=(0, 2, 3), keepdims=True)
    var = jnp.mean((ref - mu) ** 2, axis=(0, 2, 3), keepdims=True)
    ref = (ref - mu) * jax.lax.rsqrt(var + BN_EPS)
    ref = ref * params["gamma"].reshape(1, Cout, 1, 1) + params["beta"].reshape(1, Cout, 1, 1)
    ref = jnp.maximum(ref, 0.0)

    assert y.shape == (N, Cout, H, W)
    assert bool(jnp.all(jnp.isfinite(y)))
    max_err = float(jnp.max(jnp.abs(y - ref)))
    assert bool(jnp.allclose(y, ref, atol=2e-2, rtol=2e-2)), f"max abs err {max_err}"
    print("KERNEL_OK")
</pallas_src>

<mosaic_0001>
module attributes {stable_mosaic.version = 11 : i64} {
  func.func @basic_conv_kernel(%arg0: memref<36x512xbf16, #tpu.memory_space<vmem>>, %arg1: memref<32x36xbf16, #tpu.memory_space<vmem>>, %arg2: memref<32x2xf32, #tpu.memory_space<vmem>>, %arg3: memref<2x32x256xf32, #tpu.memory_space<vmem>>) attributes {dimension_semantics = [], scalar_prefetch = 0 : i64, scratch_operands = 0 : i64, tpu.core_type = #tpu.core_type<tc>} {
    %c0 = arith.constant 0 : index
    %c0_0 = arith.constant 0 : index
    %0 = vector.load %arg1[%c0, %c0_0] : memref<32x36xbf16, #tpu.memory_space<vmem>>, vector<32x36xbf16>
    %c0_1 = arith.constant 0 : index
    %c0_2 = arith.constant 0 : index
    %1 = vector.load %arg0[%c0_1, %c0_2] : memref<36x512xbf16, #tpu.memory_space<vmem>>, vector<36x512xbf16>
    %cst = arith.constant dense<0.000000e+00> : vector<32x512xf32>
    %2 = tpu.matmul %0, %1, %cst {dimension_numbers = #tpu.dot_dimension_numbers<[1], [0], [0], [1], [0, 0, 1, 1], [], []>} : vector<32x36xbf16>, vector<36x512xbf16>, vector<32x512xf32> -> vector<32x512xf32>
    %cst_3 = arith.constant dense<0.000000e+00> : vector<32xf32>
    %3 = vector.multi_reduction <add>, %2, %cst_3 [1] : vector<32x512xf32> to vector<32xf32>
    %4 = vector.shape_cast %3 : vector<32xf32> to vector<32x1xf32>
    %cst_4 = arith.constant 5.120000e+02 : f32
    %5 = vector.broadcast %cst_4 : f32 to vector<32x1xf32>
    %6 = arith.divf %4, %5 : vector<32x1xf32>
    %7 = vector.broadcast %6 : vector<32x1xf32> to vector<32x512xf32>
    %8 = arith.subf %2, %7 : vector<32x512xf32>
    %9 = arith.mulf %8, %8 : vector<32x512xf32>
    %cst_5 = arith.constant dense<0.000000e+00> : vector<32xf32>
    %10 = vector.multi_reduction <add>, %9, %cst_5 [1] : vector<32x512xf32> to vector<32xf32>
    %11 = vector.shape_cast %10 : vector<32xf32> to vector<32x1xf32>
    %cst_6 = arith.constant 5.120000e+02 : f32
    %12 = vector.broadcast %cst_6 : f32 to vector<32x1xf32>
    %13 = arith.divf %11, %12 : vector<32x1xf32>
    %c0_7 = arith.constant 0 : index
    %c0_8 = arith.constant 0 : index
    %14 = vector.load %arg2[%c0_7, %c0_8] : memref<32x2xf32, #tpu.memory_space<vmem>>, vector<32x1xf32>
    %cst_9 = arith.constant 0.000000e+00 : f32
    %15 = vector.broadcast %cst_9 : f32 to vector<32x1xf32>
    %16 = arith.maximumf %13, %15 : vector<32x1xf32>
    %cst_10 = arith.constant 9.99999974E-6 : f32
    %17 = vector.broadcast %cst_10 : f32 to vector<32x1xf32>
    %18 = arith.addf %16, %17 : vector<32x1xf32>
    %19 = math.rsqrt %18 : vector<32x1xf32>
    %20 = arith.mulf %14, %19 : vector<32x1xf32>
    %21 = vector.broadcast %20 : vector<32x1xf32> to vector<32x512xf32>
    %22 = arith.mulf %8, %21 : vector<32x512xf32>
    %c0_11 = arith.constant 0 : index
    %c1 = arith.constant 1 : index
    %23 = vector.load %arg2[%c0_11, %c1] : memref<32x2xf32, #tpu.memory_space<vmem>>, vector<32x1xf32>
    %24 = vector.broadcast %23 : vector<32x1xf32> to vector<32x512xf32>
    %25 = arith.addf %22, %24 : vector<32x512xf32>
    %cst_12 = arith.constant 0.000000e+00 : f32
    %26 = vector.broadcast %cst_12 : f32 to vector<32x512xf32>
    %27 = arith.maximumf %25, %26 : vector<32x512xf32>
    %28 = vector.extract_strided_slice %27 {offsets = [0, 0], sizes = [32, 256], strides = [1, 1]} : vector<32x512xf32> to vector<32x256xf32>
    %c0_13 = arith.constant 0 : index
    %c0_14 = arith.constant 0 : index
    %c0_15 = arith.constant 0 : index
    %29 = vector.load %arg3[%c0_13, %c0_14, %c0_15] : memref<2x32x256xf32, #tpu.memory_space<vmem>>, vector<1x32x256xf32>
    %30 = vector.shape_cast %29 : vector<1x32x256xf32> to vector<32x256xf32>
    %31 = vector.shape_cast %28 : vector<32x256xf32> to vector<1x32x256xf32>
    tpu.vector_store %arg3[%c0_13, %c0_14, %c0_15], %31 {strides = array<i32>} : memref<2x32x256xf32, #tpu.memory_space<vmem>>, vector<1x32x256xf32>,
    %32 = vector.extract_strided_slice %27 {offsets = [0, 256], sizes = [32, 256], strides = [1, 1]} : vector<32x512xf32> to vector<32x256xf32>
    %c1_16 = arith.constant 1 : index
    %c0_17 = arith.constant 0 : index
    %c0_18 = arith.constant 0 : index
    %33 = vector.load %arg3[%c1_16, %c0_17, %c0_18] : memref<2x32x256xf32, #tpu.memory_space<vmem>>, vector<1x32x256xf32>
    %34 = vector.shape_cast %33 : vector<1x32x256xf32> to vector<32x256xf32>
    %35 = vector.shape_cast %32 : vector<32x256xf32> to vector<1x32x256xf32>
    tpu.vector_store %arg3[%c1_16, %c0_17, %c0_18], %35 {strides = array<i32>} : memref<2x32x256xf32, #tpu.memory_space<vmem>>, vector<1x32x256xf32>,
    return
  }
}

</mosaic_0001>

<llo_original>
// kernel: basic_conv_forward.1
$region0: #{basic_conv_forward.1}
  #allocation0 [shape = 'u32[]', space=smem, size = 0x4, offset = 0x4, fixed_abs, tag = 'smem constant byte address 0x4 - core index']
  #allocation1 [shape = 'u32[144,128]{1,0:T(1,128)}', space=vmem, size = 0x12000, scoped, tag = 'internal scratch']
  %s0 = inlined_call_operand.vmem [shape: bf16[36,512], index: 0, kind: input, shape index: {}]
  %s1 = inlined_call_operand.vmem [shape: bf16[32,36], index: 1, kind: input, shape index: {}]
  %s2 = inlined_call_operand.vmem [shape: f32[32,2], index: 2, kind: input, shape index: {}]
  %s3 = inlined_call_operand.vmem [shape: f32[2,32,256], index: 3, kind: output, shape index: {}]
  %s4 = sld [smem:[#allocation0]]
  $region22: #{basic_conv_forward.1} parent=0
    _
  %s6 = ssub.s32 1, %s4
  %s7 = scalar_select 0, %s6, %s4
  // Predicated region
  $region2: #{basic_conv_forward.1} parent=0 // pred_check
    _
  $region3: #{basic_conv_forward.1} parent=0 // pred_check_branch
    %9 = sbr.rel (0) target = $region5
  $region4: #{basic_conv_forward.1} parent=0 // pred_region
    _
  $region5: #{basic_conv_forward.1} parent=0 // pred_fallthru
    _
  // Predicated region
  $region6: #{basic_conv_forward.1} parent=0 // pred_check
    _
  $region7: #{basic_conv_forward.1} parent=0 // pred_check_branch
    %11 = sbr.rel (0) target = $region9
  $region8: #{basic_conv_forward.1} parent=0 // pred_region
    _
  $region9: #{basic_conv_forward.1} parent=0 // pred_fallthru
    _
  // Predicated region
  $region10: #{basic_conv_forward.1} parent=0 // pred_check
    _
  $region11: #{basic_conv_forward.1} parent=0 // pred_check_branch
    %13 = sbr.rel (0) target = $region13
  $region12: #{basic_conv_forward.1} parent=0 // pred_region
    _
  $region13: #{basic_conv_forward.1} parent=0 // pred_fallthru
    _
  %v15 = vld [vmem:[%s1] sm:$0xf]
  %v16 = vld [vmem:[%s1 + $0x4] sm:$0xf]
  %v17 = vld [vmem:[%s1 + $0x8] sm:$0xf]
  %v18 = vld [vmem:[%s1 + $0xc] sm:$0xf]
  %v19 = vld [vmem:[%s0] sm:$0xff]
  %v20 = vld [vmem:[%s0 + $0x8] sm:$0xff]
  %v21 = vld [vmem:[%s0 + $0x10] sm:$0xff]
  %v22 = vld [vmem:[%s0 + $0x18] sm:$0xff]
  %v23 = vld [vmem:[%s0 + $0x20] sm:$0xff]
  %v24 = vld [vmem:[%s0 + $0x28] sm:$0xff]
  %v25 = vld [vmem:[%s0 + $0x30] sm:$0xff]
  %v26 = vld [vmem:[%s0 + $0x38] sm:$0xff]
  %v27 = vld [vmem:[%s0 + $0x40] sm:$0x33]
  %v28 = vld [vmem:[%s0 + $0x48] sm:$0x33]
  %v33 = vunpack.c.l.b16 %v15
  %v34 = vunpack.c.l.b16 %v16
  %v35 = vunpack.c.l.b16 %v17
  %v36 = vunpack.c.l.b16 %v18
  %v37 = vpack.c.b16 %v34, %v33
  %v38 = vpack.c.b16 %v36, %v35
  %v49 = vunpack.c.l.b16 %v19
  %v50 = vunpack.c.h.b16 %v19
  %v51 = vunpack.c.l.b16 %v20
  %v52 = vunpack.c.h.b16 %v20
  %v53 = vunpack.c.l.b16 %v21
  %v54 = vunpack.c.h.b16 %v21
  %v55 = vunpack.c.l.b16 %v22
  %v56 = vunpack.c.h.b16 %v22
  %v57 = vunpack.c.l.b16 %v23
  %v58 = vunpack.c.h.b16 %v23
  %v59 = vunpack.c.l.b16 %v24
  %v60 = vunpack.c.h.b16 %v24
  %v61 = vunpack.c.l.b16 %v25
  %v62 = vunpack.c.h.b16 %v25
  %v63 = vunpack.c.l.b16 %v26
  %v64 = vunpack.c.h.b16 %v26
  %v65 = vunpack.c.l.b16 %v27
  %v66 = vunpack.c.h.b16 %v27
  %v67 = vunpack.c.l.b16 %v28
  %v68 = vunpack.c.h.b16 %v28
  %v69 = vpack.c.b16 %v53, %v49
  %v70 = vpack.c.b16 %v54, %v50
  %v71 = vpack.c.b16 %v55, %v51
  %v72 = vpack.c.b16 %v56, %v52
  %v73 = vpack.c.b16 %v61, %v57
  %v74 = vpack.c.b16 %v62, %v58
  %v75 = vpack.c.b16 %v63, %v59
  %v76 = vpack.c.b16 %v64, %v60
  %v77 = vpack.c.b16 %v65, %v65
  %v78 = vpack.c.b16 %v66, %v66
  %v79 = vpack.c.b16 %v67, %v67
  %v80 = vpack.c.b16 %v68, %v68
  %vm89 = vcmask 293888
  %v91 = vsel %vm89, %v37, 0
  %v94 = vsel %vm89, %v38, 0
  %vm96 = vcmask 1041408
  %v98 = vsel %vm96, %v77, 0
  %v101 = vsel %vm96, %v78, 0
  %v104 = vsel %vm96, %v79, 0
  %v107 = vsel %vm96, %v80, 0
  %109 = vmatprep.subr.bf16.mxu0 0
  %110 = vmatpush1.bf16.msra.mxu0 0
  %111 = vmatprep.subr.bf16.mxu0 0
  %112 = vmatpush1.bf16.msra.mxu0 0
  %113 = vmatprep.subr.bf16.mxu0 0
  %114 = vmatpush1.bf16.msra.mxu0 0
  %115 = vmatprep.subr.bf16.mxu0 0
  %116 = vmatpush1.bf16.msra.mxu0 0
  %117 = vmatprep.subr.bf16.mxu0 0
  %118 = vmatpush1.bf16.msra.mxu0 0
  %119 = vmatprep.subr.bf16.mxu0 %v101
  %120 = vmatpush1.bf16.msra.mxu0 %v98
  %121 = vmatprep.subr.bf16.mxu0 %v74
  %122 = vmatpush1.bf16.msra.mxu0 %v73
  %123 = vmatprep.subr.bf16.mxu0 %v70
  %124 = vmatpush1.bf16.msra.mxu0 %v69
  %125 = vmatprep.subr.bf16.mxu0 0
  %126 = vmatpush2.bf16.msra.mxu0 0
  %127 = vmatprep.subr.bf16.mxu0 0
  %128 = vmatpush2.bf16.msra.mxu0 0
  %129 = vmatprep.subr.bf16.mxu0 0
  %130 = vmatpush2.bf16.msra.mxu0 0
  %131 = vmatprep.subr.bf16.mxu0 0
  %132 = vmatpush2.bf16.msra.mxu0 0
  %133 = vmatprep.subr.bf16.mxu0 0
  %134 = vmatpush2.bf16.msra.mxu0 0
  %135 = vmatprep.subr.bf16.mxu0 0
  %136 = vmatpush2.bf16.msra.mxu0 0
  %137 = vmatprep.subr.bf16.mxu0 0
  %138 = vmatpush2.bf16.msra.mxu0 0
  %139 = vmatprep.subr.bf16.mxu0 0
  %140 = vmatpush2.bf16.msra.mxu0 0
  %141 = vmatprep.mubr.bf16.mxu0 0
  %142 = vmatmul.mubr.bf16.gmra.mxu0 %v91
  %v143 = vpop.f32.mrf.mxu0
  %v144 = vadd.f32 0.0, %v143
  %v145 = vpop.f32.mrf.mxu0
  %v146 = vadd.f32 0.0, %v145
  %v147 = vpop.f32.mrf.mxu0
  %v148 = vadd.f32 0.0, %v147
  %v149 = vpop.f32.mrf.mxu0
  %v150 = vadd.f32 0.0, %v149
  %151 = vmatprep.mubr.bf16.mxu0 0
  %152 = vmatmul.mubr.bf16.gmra.mxu0 %v94
  %v153 = vpop.f32.mrf.mxu0
  %v154 = vadd.f32 0.0, %v153
  %v155 = vpop.f32.mrf.mxu0
  %v156 = vadd.f32 0.0, %v155
  %v157 = vpop.f32.mrf.mxu0
  %v158 = vadd.f32 0.0, %v157
  %v159 = vpop.f32.mrf.mxu0
  %v160 = vadd.f32 0.0, %v159
  %161 = vdwg.mxu0
  %162 = vmatprep.subr.bf16.mxu0 0
  %163 = vmatpush1.bf16.msra.mxu0 0
  %164 = vmatprep.subr.bf16.mxu0 0
  %165 = vmatpush1.bf16.msra.mxu0 0
  %166 = vmatprep.subr.bf16.mxu0 0
  %167 = vmatpush1.bf16.msra.mxu0 0
  %168 = vmatprep.subr.bf16.mxu0 0
  %169 = vmatpush1.bf16.msra.mxu0 0
  %170 = vmatprep.subr.bf16.mxu0 0
  %171 = vmatpush1.bf16.msra.mxu0 0
  %172 = vmatprep.subr.bf16.mxu0 %v107
  %173 = vmatpush1.bf16.msra.mxu0 %v104
  %174 = vmatprep.subr.bf16.mxu0 %v76
  %175 = vmatpush1.bf16.msra.mxu0 %v75
  %176 = vmatprep.subr.bf16.mxu0 %v72
  %177 = vmatpush1.bf16.msra.mxu0 %v71
  %178 = vmatprep.subr.bf16.mxu0 0
  %179 = vmatpush2.bf16.msra.mxu0 0
  %180 = vmatprep.subr.bf16.mxu0 0
  %181 = vmatpush2.bf16.msra.mxu0 0
  %182 = vmatprep.subr.bf16.mxu0 0
  %183 = vmatpush2.bf16.msra.mxu0 0
  %184 = vmatprep.subr.bf16.mxu0 0
  %185 = vmatpush2.bf16.msra.mxu0 0
  %186 = vmatprep.subr.bf16.mxu0 0
  %187 = vmatpush2.bf16.msra.mxu0 0
  %188 = vmatprep.subr.bf16.mxu0 0
  %189 = vmatpush2.bf16.msra.mxu0 0
  %190 = vmatprep.subr.bf16.mxu0 0
  %191 = vmatpush2.bf16.msra.mxu0 0
  %192 = vmatprep.subr.bf16.mxu0 0
  %193 = vmatpush2.bf16.msra.mxu0 0
  %194 = vmatprep.mubr.bf16.mxu0 0
  %195 = vmatmul.mubr.bf16.gmra.mxu0 %v91
  %v196 = vpop.f32.mrf.mxu0
  %v197 = vadd.f32 0.0, %v196
  %v198 = vpop.f32.mrf.mxu0
  %v199 = vadd.f32 0.0, %v198
  %v200 = vpop.f32.mrf.mxu0
  %v201 = vadd.f32 0.0, %v200
  %v202 = vpop.f32.mrf.mxu0
  %v203 = vadd.f32 0.0, %v202
  %204 = vmatprep.mubr.bf16.mxu0 0
  %205 = vmatmul.mubr.bf16.gmra.mxu0 %v94
  %v206 = vpop.f32.mrf.mxu0
  %v207 = vadd.f32 0.0, %v206
  %v208 = vpop.f32.mrf.mxu0
  %v209 = vadd.f32 0.0, %v208
  %v210 = vpop.f32.mrf.mxu0
  %v211 = vadd.f32 0.0, %v210
  %v212 = vpop.f32.mrf.mxu0
  %v213 = vadd.f32 0.0, %v212
  %214 = vdwg.mxu0
  %v215 = vadd.f32 %v144, %v146
  %v216 = vadd.f32 %v215, %v197
  %v217 = vadd.f32 %v216, %v199
  %218 = vadd.xlane.f32.xlu0 %v217
  %v219 = vpop.xlane.xlu0 %218
  %v220 = vadd.f32 %v148, %v150
  %v221 = vadd.f32 %v220, %v201
  %v222 = vadd.f32 %v221, %v203
  %223 = vadd.xlane.f32.xlu0 %v222
  %v224 = vpop.xlane.xlu0 %223
  %v225 = vadd.f32 %v154, %v156
  %v226 = vadd.f32 %v225, %v207
  %v227 = vadd.f32 %v226, %v209
  %228 = vadd.xlane.f32.xlu0 %v227
  %v229 = vpop.xlane.xlu0 %228
  %v230 = vadd.f32 %v158, %v160
  %v231 = vadd.f32 %v230, %v211
  %v232 = vadd.f32 %v231, %v213
  %233 = vadd.xlane.f32.xlu0 %v232
  %v234 = vpop.xlane.xlu0 %233
  %v235 = vrcp.pop 512.0
  %v236 = vmul.f32 %v219, %v235
  %v237 = vmul.f32 %v224, %v235
  %v238 = vmul.f32 %v229, %v235
  %v239 = vmul.f32 %v234, %v235
  %v240 = vsub.f32 %v144, %v236
  %v241 = vsub.f32 %v146, %v236
  %v242 = vsub.f32 %v197, %v236
  %v243 = vsub.f32 %v199, %v236
  %v244 = vsub.f32 %v148, %v237
  %v245 = vsub.f32 %v150, %v237
  %v246 = vsub.f32 %v201, %v237
  %v247 = vsub.f32 %v203, %v237
  %v248 = vsub.f32 %v154, %v238
  %v249 = vsub.f32 %v156, %v238
  %v250 = vsub.f32 %v207, %v238
  %v251 = vsub.f32 %v209, %v238
  %v252 = vsub.f32 %v158, %v239
  %v253 = vsub.f32 %v160, %v239
  %v254 = vsub.f32 %v211, %v239
  %v255 = vsub.f32 %v213, %v239
  %v256 = vmul.f32 %v240, %v240
  %v257 = vmul.f32 %v241, %v241
  %v258 = vmul.f32 %v242, %v242
  %v259 = vmul.f32 %v243, %v243
  %v260 = vmul.f32 %v244, %v244
  %v261 = vmul.f32 %v245, %v245
  %v262 = vmul.f32 %v246, %v246
  %v263 = vmul.f32 %v247, %v247
  %v264 = vmul.f32 %v248, %v248
  %v265 = vmul.f32 %v249, %v249
  %v266 = vmul.f32 %v250, %v250
  %v267 = vmul.f32 %v251, %v251
  %v268 = vmul.f32 %v252, %v252
  %v269 = vmul.f32 %v253, %v253
  %v270 = vmul.f32 %v254, %v254
  %v271 = vmul.f32 %v255, %v255
  %v272 = vadd.f32 %v256, %v257
  %v273 = vadd.f32 %v272, %v258
  %v274 = vadd.f32 %v273, %v259
  %275 = vadd.xlane.f32.xlu0 %v274
  %v276 = vpop.xlane.xlu0 %275
  %v277 = vadd.f32 %v260, %v261
  %v278 = vadd.f32 %v277, %v262
  %v279 = vadd.f32 %v278, %v263
  %280 = vadd.xlane.f32.xlu0 %v279
  %v281 = vpop.xlane.xlu0 %280
  %v282 = vadd.f32 %v264, %v265
  %v283 = vadd.f32 %v282, %v266
  %v284 = vadd.f32 %v283, %v267
  %285 = vadd.xlane.f32.xlu0 %v284
  %v286 = vpop.xlane.xlu0 %285
  %v287 = vadd.f32 %v268, %v269
  %v288 = vadd.f32 %v287, %v270
  %v289 = vadd.f32 %v288, %v271
  %290 = vadd.xlane.f32.xlu0 %v289
  %v291 = vpop.xlane.xlu0 %290
  %v292 = vmul.f32 %v276, %v235
  %v293 = vmul.f32 %v281, %v235
  %v294 = vmul.f32 %v286, %v235
  %v295 = vmul.f32 %v291, %v235
  %v296 = vld [vmem:[%s2] sm:$0xff]
  %v297 = vld [vmem:[%s2 + $0x8] sm:$0xff]
  %v298 = vld [vmem:[%s2 + $0x10] sm:$0xff]
  %v299 = vld [vmem:[%s2 + $0x18] sm:$0xff]
  %v300 = vmax.f32 %v292, 0.0
  %v301 = vmax.f32 %v293, 0.0
  %v302 = vmax.f32 %v294, 0.0
  %v303 = vmax.f32 %v295, 0.0
  %v304 = vadd.f32 %v300, 1e-05
  %v305 = vadd.f32 %v301, 1e-05
  %v306 = vadd.f32 %v302, 1e-05
  %v307 = vadd.f32 %v303, 1e-05
  %v308 = vrsqrt.pop %v304
  %v309 = vrsqrt.pop %v305
  %v310 = vrsqrt.pop %v306
  %v311 = vrsqrt.pop %v307
  %v312 = vmul.f32 %v296, %v308
  %v313 = vmul.f32 %v297, %v309
  %v314 = vmul.f32 %v298, %v310
  %v315 = vmul.f32 %v299, %v311
  %317 = vset.pattern.permute.xlu0 0
  %318 = vperm.xlu0 %317, %v312
  %v319 = vpop.permute.xlu0 %318
  %322 = vset.pattern.permute.xlu0 0
  %323 = vperm.xlu0 %322, %v313
  %v324 = vpop.permute.xlu0 %323
  %327 = vset.pattern.permute.xlu0 0
  %328 = vperm.xlu0 %327, %v314
  %v329 = vpop.permute.xlu0 %328
  %332 = vset.pattern.permute.xlu0 0
  %333 = vperm.xlu0 %332, %v315
  %v334 = vpop.permute.xlu0 %333
  %v336 = vmul.f32 %v240, %v319
  %v337 = vmul.f32 %v241, %v319
  %v338 = vmul.f32 %v242, %v319
  %v339 = vmul.f32 %v243, %v319
  %v340 = vmul.f32 %v244, %v324
  %v341 = vmul.f32 %v245, %v324
  %v342 = vmul.f32 %v246, %v324
  %v343 = vmul.f32 %v247, %v324
  %v344 = vmul.f32 %v248, %v329
  %v345 = vmul.f32 %v249, %v329
  %v346 = vmul.f32 %v250, %v329
  %v347 = vmul.f32 %v251, %v329
  %v348 = vmul.f32 %v252, %v334
  %v349 = vmul.f32 %v253, %v334
  %v350 = vmul.f32 %v254, %v334
  %v351 = vmul.f32 %v255, %v334
  %353 = vset.pattern.permute.xlu0 1
  %354 = vperm.xlu0 %353, %v296
  %v355 = vpop.permute.xlu0 %354
  %358 = vset.pattern.permute.xlu0 1
  %359 = vperm.xlu0 %358, %v297
  %v360 = vpop.permute.xlu0 %359
  %363 = vset.pattern.permute.xlu0 1
  %364 = vperm.xlu0 %363, %v298
  %v365 = vpop.permute.xlu0 %364
  %368 = vset.pattern.permute.xlu0 1
  %369 = vperm.xlu0 %368, %v299
  %v370 = vpop.permute.xlu0 %369
  %v372 = vadd.f32 %v336, %v355
  %v373 = vadd.f32 %v337, %v355
  %v374 = vadd.f32 %v338, %v355
  %v375 = vadd.f32 %v339, %v355
  %v376 = vadd.f32 %v340, %v360
  %v377 = vadd.f32 %v341, %v360
  %v378 = vadd.f32 %v342, %v360
  %v379 = vadd.f32 %v343, %v360
  %v380 = vadd.f32 %v344, %v365
  %v381 = vadd.f32 %v345, %v365
  %v382 = vadd.f32 %v346, %v365
  %v383 = vadd.f32 %v347, %v365
  %v384 = vadd.f32 %v348, %v370
  %v385 = vadd.f32 %v349, %v370
  %v386 = vadd.f32 %v350, %v370
  %v387 = vadd.f32 %v351, %v370
  %v388 = vmax.f32 %v372, 0.0
  %v389 = vmax.f32 %v373, 0.0
  %v390 = vmax.f32 %v374, 0.0
  %v391 = vmax.f32 %v375, 0.0
  %v392 = vmax.f32 %v376, 0.0
  %v393 = vmax.f32 %v377, 0.0
  %v394 = vmax.f32 %v378, 0.0
  %v395 = vmax.f32 %v379, 0.0
  %v396 = vmax.f32 %v380, 0.0
  %v397 = vmax.f32 %v381, 0.0
  %v398 = vmax.f32 %v382, 0.0
  %v399 = vmax.f32 %v383, 0.0
  %v400 = vmax.f32 %v384, 0.0
  %v401 = vmax.f32 %v385, 0.0
  %v402 = vmax.f32 %v386, 0.0
  %v403 = vmax.f32 %v387, 0.0
  %404 = vst [vmem:[%s3] sm:$0xff] %v388
  %405 = vst [vmem:[%s3 + $0x8] sm:$0xff] %v389
  %406 = vst [vmem:[%s3 + $0x10] sm:$0xff] %v392
  %407 = vst [vmem:[%s3 + $0x18] sm:$0xff] %v393
  %408 = vst [vmem:[%s3 + $0x20] sm:$0xff] %v396
  %409 = vst [vmem:[%s3 + $0x28] sm:$0xff] %v397
  %410 = vst [vmem:[%s3 + $0x30] sm:$0xff] %v400
  %411 = vst [vmem:[%s3 + $0x38] sm:$0xff] %v401
  %s412 = scalar_lea.vmem %s3, 64
  %413 = vst [vmem:[%s412] sm:$0xff] %v390
  %414 = vst [vmem:[%s412 + $0x8] sm:$0xff] %v391
  %415 = vst [vmem:[%s412 + $0x10] sm:$0xff] %v394
  %416 = vst [vmem:[%s412 + $0x18] sm:$0xff] %v395
  %417 = vst [vmem:[%s412 + $0x20] sm:$0xff] %v398
  %418 = vst [vmem:[%s412 + $0x28] sm:$0xff] %v399
  %419 = vst [vmem:[%s412 + $0x30] sm:$0xff] %v402
  %420 = vst [vmem:[%s412 + $0x38] sm:$0xff] %v403
  // Predicated region
  $region14: #{basic_conv_forward.1} parent=0 // pred_check
    _
  $region15: #{basic_conv_forward.1} parent=0 // pred_check_branch
    %422 = sbr.rel (0) target = $region17
  $region16: #{basic_conv_forward.1} parent=0 // pred_region
    _
  $region17: #{basic_conv_forward.1} parent=0 // pred_fallthru
    _
  // Predicated region
  $region18: #{basic_conv_forward.1} parent=0 // pred_check
    _
  $region19: #{basic_conv_forward.1} parent=0 // pred_check_branch
    %424 = sbr.rel (0) target = $region21
  $region20: #{basic_conv_forward.1} parent=0 // pred_region
    _
  $region21: #{basic_conv_forward.1} parent=0 // pred_fallthru
    _

</llo_original>
